<compile_context>
chip_gen: v7x
topology: tpu7x:2x2x1
jax: 0.10.0
libtpu: 0.0.40
codegen_flags: <defaults>
</compile_context>

<pallas_src>
import jax
import jax.numpy as jnp
from jax.experimental import pallas as pl
from jax.experimental.pallas import tpu as pltpu

IN_DIM = 115
HIDDEN = 256
OUT_DIM = 19
K_PAD = 128   # 115 -> 128 (lane-aligned input / w1 K dim)
N_PAD = 128   # 19  -> 128 (lane-dense output)
NEG_SLOPE = 0.01  # nn.LeakyReLU default negative_slope


def _leaky_relu(x):
    return jnp.where(x > 0, x, NEG_SLOPE * x)


def _round_up(x, m):
    return (x + m - 1) // m * m


def mlp_kernel(x_ref, w1_ref, b1_ref, w2_ref, b2_ref, w3_ref, b3_ref, out_ref):
    # One batch tile per grid step: three MXU matmuls (bf16 operands, f32 accum)
    # plus VPU bias-add / LeakyReLU. Weights stay VMEM-resident across steps.
    x = x_ref[...]  # already bf16

    h = jnp.dot(x, w1_ref[...], preferred_element_type=jnp.float32) + b1_ref[...]
    h = _leaky_relu(h)

    h = jnp.dot(h.astype(jnp.bfloat16), w2_ref[...],
                preferred_element_type=jnp.float32) + b2_ref[...]
    h = _leaky_relu(h)

    logits = jnp.dot(h.astype(jnp.bfloat16), w3_ref[...],
                     preferred_element_type=jnp.float32) + b3_ref[...]
    out_ref[...] = logits.astype(out_ref.dtype)


def mlp_forward(x, padded_params, *, block_b=1024):
    """x: (B, 115) float32 -> logits (B, 19) float32."""
    w1, b1, w2, b2, w3, b3 = padded_params
    B = x.shape[0]

    # Clamp the tile to the batch (rounded to the 8-sublane granule) so tiny
    # batches don't burn a full 1024-row tile of MXU/VPU work.
    block_b_eff = min(block_b, _round_up(B, 8))
    n_blocks = pl.cdiv(B, block_b_eff)

    # Single cheap pass: fuse feature pad 115 -> 128 with the f32 -> bf16 cast.
    # No batch padding — Pallas masks the partial last block (rows independent).
    x_p = jnp.pad(x, ((0, 0), (0, K_PAD - IN_DIM))).astype(jnp.bfloat16)

    flops = 2 * B * (K_PAD * HIDDEN + HIDDEN * HIDDEN + HIDDEN * N_PAD)
    bytes_accessed = int(
        x_p.size * 2                      # bf16 input stream
        + B * N_PAD * 2                   # bf16 output stream
        + sum(int(p.size) * p.dtype.itemsize for p in padded_params))

    out = pl.pallas_call(
        mlp_kernel,
        out_shape=jax.ShapeDtypeStruct((B, N_PAD), jnp.bfloat16),
        grid=(n_blocks,),
        in_specs=[
            # x tile: pipelined over the batch grid.
            pl.BlockSpec((block_b_eff, K_PAD), lambda i: (i, 0)),
            # Weights / biases: constant block index -> fetched once, VMEM-resident.
            pl.BlockSpec((K_PAD, HIDDEN), lambda i: (0, 0)),
            pl.BlockSpec((1, HIDDEN), lambda i: (0, 0)),
            pl.BlockSpec((HIDDEN, HIDDEN), lambda i: (0, 0)),
            pl.BlockSpec((1, HIDDEN), lambda i: (0, 0)),
            pl.BlockSpec((HIDDEN, N_PAD), lambda i: (0, 0)),
            pl.BlockSpec((1, N_PAD), lambda i: (0, 0)),
        ],
        out_specs=pl.BlockSpec((block_b_eff, N_PAD), lambda i: (i, 0)),
        compiler_params=pltpu.CompilerParams(
            dimension_semantics=("parallel",)),
        cost_estimate=pl.CostEstimate(
            flops=flops, transcendentals=0, bytes_accessed=bytes_accessed),
    )(x_p, w1, b1, w2, b2, w3, b3)

    # Slice to the 19 real logit columns and return f32 for the caller.
    return out[:, :OUT_DIM].astype(jnp.float32)


def init_params(key, hidden_size=HIDDEN):
    """Deterministic init mimicking PyTorch's default Linear init
    (uniform in +/- 1/sqrt(fan_in)). Weights stored as (in, out) so the
    kernel computes x @ W + b (== PyTorch's x @ W.T + b)."""
    ks = jax.random.split(key, 6)

    def linear(kw, kb, fan_in, fan_out):
        bound = 1.0 / jnp.sqrt(fan_in)
        w = jax.random.uniform(kw, (fan_in, fan_out), jnp.float32, -bound, bound)
        b = jax.random.uniform(kb, (1, fan_out), jnp.float32, -bound, bound)
        return w, b

    w1, b1 = linear(ks[0], ks[1], IN_DIM, hidden_size)
    w2, b2 = linear(ks[2], ks[3], hidden_size, hidden_size)
    w3, b3 = linear(ks[4], ks[5], hidden_size, OUT_DIM)
    return (w1, b1, w2, b2, w3, b3)


def prepare_params(params):
    """Zero-pad to lane-dense shapes and cast weights to bf16 (biases stay f32).

    Note: w1's padded rows 115..127 MUST be exactly zero so the zero-padded x
    feature columns cannot contribute to the result."""
    w1, b1, w2, b2, w3, b3 = params
    w1_p = jnp.pad(w1, ((0, K_PAD - IN_DIM), (0, 0))).astype(jnp.bfloat16)
    w3_p = jnp.pad(w3, ((0, 0), (0, N_PAD - OUT_DIM))).astype(jnp.bfloat16)
    b3_p = jnp.pad(b3, ((0, 0), (0, N_PAD - OUT_DIM)))
    return (w1_p, b1, w2.astype(jnp.bfloat16), b2, w3_p, b3_p)


def mlp_reference(x, params):
    """Pure-JAX f32 reference of the original module's forward."""
    w1, b1, w2, b2, w3, b3 = params
    h = _leaky_relu(x @ w1 + b1)
    h = _leaky_relu(h @ w2 + b2)
    return h @ w3 + b3


if __name__ == "__main__":
    key = jax.random.PRNGKey(0)
    k_params, k_x = jax.random.split(key)

    params = init_params(k_params, hidden_size=HIDDEN)
    padded_params = prepare_params(params)

    x = jax.random.normal(k_x, (8, IN_DIM), dtype=jnp.float32)  # batch=8

    logits = mlp_forward(x, padded_params)
    logits = jax.block_until_ready(logits)

    ref = mlp_reference(x, params)
    assert logits.shape == (8, OUT_DIM)
    # bf16 operands / bf16 output vs. full-f32 reference -> modest tolerance.
    assert jnp.allclose(logits, ref, atol=5e-2, rtol=5e-2), (
        float(jnp.max(jnp.abs(logits - ref))))

    print("KERNEL_OK")
</pallas_src>

<mosaic_0001>
module attributes {stable_mosaic.version = 11 : i64} {
  func.func @mlp_kernel(%arg0: i32, %arg1: memref<8x128xbf16, #tpu.memory_space<vmem>>, %arg2: memref<128x256xbf16, #tpu.memory_space<vmem>>, %arg3: memref<1x256xf32, #tpu.memory_space<vmem>>, %arg4: memref<256x256xbf16, #tpu.memory_space<vmem>>, %arg5: memref<1x256xf32, #tpu.memory_space<vmem>>, %arg6: memref<256x128xbf16, #tpu.memory_space<vmem>>, %arg7: memref<1x128xf32, #tpu.memory_space<vmem>>, %arg8: memref<8x128xbf16, #tpu.memory_space<vmem>>) attributes {dimension_semantics = [#tpu.dimension_semantics<parallel>], iteration_bounds = array<i64: 1>, scalar_prefetch = 0 : i64, scratch_operands = 0 : i64, tpu.core_type = #tpu.core_type<tc>, window_params = [{transform_indices = @transform_0, window_bounds = array<i64: 8, 128>}, {pipeline_mode = #tpu.pipeline_mode<synchronous>, transform_indices = @transform_1, window_bounds = array<i64: 128, 256>}, {pipeline_mode = #tpu.pipeline_mode<synchronous>, transform_indices = @transform_2, window_bounds = array<i64: 1, 256>}, {pipeline_mode = #tpu.pipeline_mode<synchronous>, transform_indices = @transform_3, window_bounds = array<i64: 256, 256>}, {pipeline_mode = #tpu.pipeline_mode<synchronous>, transform_indices = @transform_4, window_bounds = array<i64: 1, 256>}, {pipeline_mode = #tpu.pipeline_mode<synchronous>, transform_indices = @transform_5, window_bounds = array<i64: 256, 128>}, {pipeline_mode = #tpu.pipeline_mode<synchronous>, transform_indices = @transform_6, window_bounds = array<i64: 1, 128>}, {transform_indices = @transform_7, window_bounds = array<i64: 8, 128>}]} {
    %c0 = arith.constant 0 : index
    %c0_0 = arith.constant 0 : index
    %0 = vector.load %arg1[%c0, %c0_0] : memref<8x128xbf16, #tpu.memory_space<vmem>>, vector<8x128xbf16>
    %c0_1 = arith.constant 0 : index
    %c0_2 = arith.constant 0 : index
    %1 = vector.load %arg2[%c0_1, %c0_2] : memref<128x256xbf16, #tpu.memory_space<vmem>>, vector<128x256xbf16>
    %cst = arith.constant dense<0.000000e+00> : vector<8x256xf32>
    %2 = tpu.matmul %0, %1, %cst {dimension_numbers = #tpu.dot_dimension_numbers<[1], [0], [0], [1], [0, 0, 1, 1], [], []>} : vector<8x128xbf16>, vector<128x256xbf16>, vector<8x256xf32> -> vector<8x256xf32>
    %c0_3 = arith.constant 0 : index
    %c0_4 = arith.constant 0 : index
    %3 = vector.load %arg3[%c0_3, %c0_4] : memref<1x256xf32, #tpu.memory_space<vmem>>, vector<1x256xf32>
    %4 = vector.broadcast %3 : vector<1x256xf32> to vector<8x256xf32>
    %5 = arith.addf %2, %4 : vector<8x256xf32>
    %cst_5 = arith.constant 0.000000e+00 : f32
    %6 = vector.broadcast %cst_5 : f32 to vector<8x256xf32>
    %7 = arith.cmpf ogt, %5, %6 : vector<8x256xf32>
    %cst_6 = arith.constant 0.00999999977 : f32
    %8 = vector.broadcast %cst_6 : f32 to vector<8x256xf32>
    %9 = arith.mulf %8, %5 : vector<8x256xf32>
    %10 = arith.select %7, %5, %9 : vector<8x256xi1>, vector<8x256xf32>
    %11 = arith.truncf %10 : vector<8x256xf32> to vector<8x256xbf16>
    %c0_7 = arith.constant 0 : index
    %c0_8 = arith.constant 0 : index
    %12 = vector.load %arg4[%c0_7, %c0_8] : memref<256x256xbf16, #tpu.memory_space<vmem>>, vector<256x256xbf16>
    %cst_9 = arith.constant dense<0.000000e+00> : vector<8x256xf32>
    %13 = tpu.matmul %11, %12, %cst_9 {dimension_numbers = #tpu.dot_dimension_numbers<[1], [0], [0], [1], [0, 0, 1, 1], [], []>} : vector<8x256xbf16>, vector<256x256xbf16>, vector<8x256xf32> -> vector<8x256xf32>
    %c0_10 = arith.constant 0 : index
    %c0_11 = arith.constant 0 : index
    %14 = vector.load %arg5[%c0_10, %c0_11] : memref<1x256xf32, #tpu.memory_space<vmem>>, vector<1x256xf32>
    %15 = vector.broadcast %14 : vector<1x256xf32> to vector<8x256xf32>
    %16 = arith.addf %13, %15 : vector<8x256xf32>
    %cst_12 = arith.constant 0.000000e+00 : f32
    %17 = vector.broadcast %cst_12 : f32 to vector<8x256xf32>
    %18 = arith.cmpf ogt, %16, %17 : vector<8x256xf32>
    %cst_13 = arith.constant 0.00999999977 : f32
    %19 = vector.broadcast %cst_13 : f32 to vector<8x256xf32>
    %20 = arith.mulf %19, %16 : vector<8x256xf32>
    %21 = arith.select %18, %16, %20 : vector<8x256xi1>, vector<8x256xf32>
    %22 = arith.truncf %21 : vector<8x256xf32> to vector<8x256xbf16>
    %c0_14 = arith.constant 0 : index
    %c0_15 = arith.constant 0 : index
    %23 = vector.load %arg6[%c0_14, %c0_15] : memref<256x128xbf16, #tpu.memory_space<vmem>>, vector<256x128xbf16>
    %cst_16 = arith.constant dense<0.000000e+00> : vector<8x128xf32>
    %24 = tpu.matmul %22, %23, %cst_16 {dimension_numbers = #tpu.dot_dimension_numbers<[1], [0], [0], [1], [0, 0, 1, 1], [], []>} : vector<8x256xbf16>, vector<256x128xbf16>, vector<8x128xf32> -> vector<8x128xf32>
    %c0_17 = arith.constant 0 : index
    %c0_18 = arith.constant 0 : index
    %25 = vector.load %arg7[%c0_17, %c0_18] : memref<1x128xf32, #tpu.memory_space<vmem>>, vector<1x128xf32>
    %26 = vector.broadcast %25 : vector<1x128xf32> to vector<8x128xf32>
    %27 = arith.addf %24, %26 : vector<8x128xf32>
    %28 = arith.truncf %27 : vector<8x128xf32> to vector<8x128xbf16>
    %c0_19 = arith.constant 0 : index
    %c0_20 = arith.constant 0 : index
    %29 = vector.load %arg8[%c0_19, %c0_20] : memref<8x128xbf16, #tpu.memory_space<vmem>>, vector<8x128xbf16>
    tpu.vector_store %arg8[%c0_19, %c0_20], %28 {strides = array<i32>} : memref<8x128xbf16, #tpu.memory_space<vmem>>, vector<8x128xbf16>,
    return
  }
  func.func @transform_0(%arg0: i32) -> (i32, i32) {
    %c0_i32 = arith.constant 0 : i32
    %c0_i32_0 = arith.constant 0 : i32
    return %arg0, %c0_i32 : i32, i32
  }
  func.func @transform_1(%arg0: i32) -> (i32, i32) {
    %c0_i32 = arith.constant 0 : i32
    %c0_i32_0 = arith.constant 0 : i32
    %c0_i32_1 = arith.constant 0 : i32
    return %c0_i32, %c0_i32_0 : i32, i32
  }
  func.func @transform_2(%arg0: i32) -> (i32, i32) {
    %c0_i32 = arith.constant 0 : i32
    %c0_i32_0 = arith.constant 0 : i32
    %c0_i32_1 = arith.constant 0 : i32
    return %c0_i32, %c0_i32_0 : i32, i32
  }
  func.func @transform_3(%arg0: i32) -> (i32, i32) {
    %c0_i32 = arith.constant 0 : i32
    %c0_i32_0 = arith.constant 0 : i32
    %c0_i32_1 = arith.constant 0 : i32
    return %c0_i32, %c0_i32_0 : i32, i32
  }
  func.func @transform_4(%arg0: i32) -> (i32, i32) {
    %c0_i32 = arith.constant 0 : i32
    %c0_i32_0 = arith.constant 0 : i32
    %c0_i32_1 = arith.constant 0 : i32
    return %c0_i32, %c0_i32_0 : i32, i32
  }
  func.func @transform_5(%arg0: i32) -> (i32, i32) {
    %c0_i32 = arith.constant 0 : i32
    %c0_i32_0 = arith.constant 0 : i32
    %c0_i32_1 = arith.constant 0 : i32
    return %c0_i32, %c0_i32_0 : i32, i32
  }
  func.func @transform_6(%arg0: i32) -> (i32, i32) {
    %c0_i32 = arith.constant 0 : i32
    %c0_i32_0 = arith.constant 0 : i32
    %c0_i32_1 = arith.constant 0 : i32
    return %c0_i32, %c0_i32_0 : i32, i32
  }
  func.func @transform_7(%arg0: i32) -> (i32, i32) {
    %c0_i32 = arith.constant 0 : i32
    %c0_i32_0 = arith.constant 0 : i32
    return %arg0, %c0_i32 : i32, i32
  }
}

</mosaic_0001>

<llo_original>
// kernel: tpu_custom_call.1
$region0: #{tpu_custom_call.1}
  #allocation0 [shape = 'u32[]', space=smem, size = 0x4, offset = 0x4, fixed_abs, tag = 'smem constant byte address 0x4 - core index']
  #allocation1 [shape = 'u32[144,128]{1,0:T(1,128)}', space=vmem, size = 0x12000, scoped, tag = 'internal scratch']
  %s0 = inlined_call_operand.hbm [shape: bf16[8,128], index: 0, kind: input, shape index: {}]
  %s1 = inlined_call_operand.hbm [shape: bf16[128,256], index: 1, kind: input, shape index: {}]
  %s2 = inlined_call_operand.vmem [shape: f32[1,256], index: 2, kind: input, shape index: {}]
  %s3 = inlined_call_operand.hbm [shape: bf16[256,256], index: 3, kind: input, shape index: {}]
  %s4 = inlined_call_operand.vmem [shape: f32[1,256], index: 4, kind: input, shape index: {}]
  %s5 = inlined_call_operand.hbm [shape: bf16[256,128], index: 5, kind: input, shape index: {}]
  %s6 = inlined_call_operand.vmem [shape: f32[1,128], index: 6, kind: input, shape index: {}]
  %s7 = inlined_call_operand.hbm [shape: bf16[8,128], index: 7, kind: output, shape index: {}]
  %s8 = sld [smem:[#allocation0]]
  $region54: #{tpu_custom_call.1} parent=0
    _
  %s10 = ssub.s32 1, %s8
  %s11 = scalar_select 0, %s10, %s8
  $region1: #{tpu_custom_call.1} parent=0
    #allocation2 [shape = 'u8[2048]{0}', space=vmem, size = 0x800, scoped, tag = 'input window, operand 0, single buffered']
    #allocation3 [shape = 's32[1]{0}', space=sflag, size = 0x4, scoped, tag = 'scoped memory for tpu_custom_call.1']
    #allocation4 [shape = 's32[1]{0}', space=sflag, size = 0x4, scoped, tag = 'scoped memory for tpu_custom_call.1']
    #allocation5 [shape = 'u8[65536]{0}', space=vmem, size = 0x10000, scoped, tag = 'input window, operand 1, single buffered']
    #allocation6 [shape = 's32[1]{0}', space=sflag, size = 0x4, scoped, tag = 'scoped memory for tpu_custom_call.1']
    #allocation7 [shape = 'u8[131072]{0}', space=vmem, size = 0x20000, scoped, tag = 'input window, operand 3, single buffered']
    #allocation8 [shape = 'u8[65536]{0}', space=vmem, size = 0x10000, scoped, tag = 'input window, operand 5, single buffered']
    #allocation9 [shape = 's32[1]{0}', space=sflag, size = 0x4, scoped, tag = 'scoped memory for tpu_custom_call.1']
    #allocation10 [shape = 'u8[2048]{0}', space=vmem, size = 0x800, scoped, tag = 'output window, operand 0, single buffered']
    %12 = vsyncpa [#allocation3], 0
    %13 = vsyncpa [#allocation6], 0
    %14 = vsyncpa [#allocation9], 0
    %15 = vsyncpa [#allocation4], 0
    // Predicated region
    $region2: #{tpu_custom_call.1} parent=1 // pred_check
      _
    $region3: #{tpu_custom_call.1} parent=1 // pred_check_branch
      %17 = sbr.rel (0) target = $region5
    $region4: #{tpu_custom_call.1} parent=1 // pred_region
      %s19 = ssub.s32 64, 64
      %20 = vsyncadd [#allocation3], %s19
      %s22 = sshll.u32 [#allocation2], 4
      %s23 = int_to_ptr.vmem [resolvable:$true] %s22
      %25 = dma.hbm_to_vmem [thread:$0]  %s0, 64, %s23, [#allocation3]
    $region5: #{tpu_custom_call.1} parent=1 // pred_fallthru
      _
    // Predicated region
    $region6: #{tpu_custom_call.1} parent=1 // pred_check
      _
    $region7: #{tpu_custom_call.1} parent=1 // pred_check_branch
      %27 = sbr.rel (0) target = $region9
    $region8: #{tpu_custom_call.1} parent=1 // pred_region
      %s29 = ssub.s32 2048, 2048
      %30 = vsyncadd [#allocation6], %s29
      %s31 = sshll.u32 [#allocation5], 4
      %s32 = int_to_ptr.vmem [resolvable:$true] %s31
      %37 = dma.hbm_to_vmem [thread:$0]  %s1, 2048, %s32, [#allocation6], 128, 128, 8
    $region9: #{tpu_custom_call.1} parent=1 // pred_fallthru
      _
    // Predicated region
    $region10: #{tpu_custom_call.1} parent=1 // pred_check
      _
    $region11: #{tpu_custom_call.1} parent=1 // pred_check_branch
      %39 = sbr.rel (0) target = $region13
    $region12: #{tpu_custom_call.1} parent=1 // pred_region
      _
    $region13: #{tpu_custom_call.1} parent=1 // pred_fallthru
      _
    // Predicated region
    $region14: #{tpu_custom_call.1} parent=1 // pred_check
      _
    $region15: #{tpu_custom_call.1} parent=1 // pred_check_branch
      %41 = sbr.rel (0) target = $region17
    $region16: #{tpu_custom_call.1} parent=1 // pred_region
      %s43 = ssub.s32 4096, 4096
      %44 = vsyncadd [#allocation6], %s43
      %s45 = sshll.u32 [#allocation7], 4
      %s46 = int_to_ptr.vmem [resolvable:$true] %s45
      %51 = dma.hbm_to_vmem [thread:$0]  %s3, 4096, %s46, [#allocation6], 128, 128, 8
    $region17: #{tpu_custom_call.1} parent=1 // pred_fallthru
      _
    // Predicated region
    $region18: #{tpu_custom_call.1} parent=1 // pred_check
      _
    $region19: #{tpu_custom_call.1} parent=1 // pred_check_branch
      %53 = sbr.rel (0) target = $region21
    $region20: #{tpu_custom_call.1} parent=1 // pred_region
      _
    $region21: #{tpu_custom_call.1} parent=1 // pred_fallthru
      _
    // Predicated region
    $region22: #{tpu_custom_call.1} parent=1 // pred_check
      _
    $region23: #{tpu_custom_call.1} parent=1 // pred_check_branch
      %55 = sbr.rel (0) target = $region25
    $region24: #{tpu_custom_call.1} parent=1 // pred_region
      %s57 = ssub.s32 2048, 2048
      %58 = vsyncadd [#allocation9], %s57
      %s59 = sshll.u32 [#allocation8], 4
      %s60 = int_to_ptr.vmem [resolvable:$true] %s59
      %65 = dma.hbm_to_vmem [thread:$0]  %s5, 2048, %s60, [#allocation9], 64, 64, 4
    $region25: #{tpu_custom_call.1} parent=1 // pred_fallthru
      _
    // Predicated region
    $region26: #{tpu_custom_call.1} parent=1 // pred_check
      _
    $region27: #{tpu_custom_call.1} parent=1 // pred_check_branch
      %67 = sbr.rel (0) target = $region29
    $region28: #{tpu_custom_call.1} parent=1 // pred_region
      _
    $region29: #{tpu_custom_call.1} parent=1 // pred_fallthru
      _
    // Predicated region
    $region30: #{tpu_custom_call.1} parent=1 // pred_check
      _
    $region31: #{tpu_custom_call.1} parent=1 // pred_check_branch
      %69 = sbr.rel (0) target = $region33
    $region32: #{tpu_custom_call.1} parent=1 // pred_region
      %70 = dma.done [#allocation3], 64
    $region33: #{tpu_custom_call.1} parent=1 // pred_fallthru
      _
    // Predicated region
    $region34: #{tpu_custom_call.1} parent=1 // pred_check
      _
    $region35: #{tpu_custom_call.1} parent=1 // pred_check_branch
      %72 = sbr.rel (0) target = $region37
    $region36: #{tpu_custom_call.1} parent=1 // pred_region
      %73 = dma.done [#allocation6], 2048
    $region37: #{tpu_custom_call.1} parent=1 // pred_fallthru
      _
    // Predicated region
    $region38: #{tpu_custom_call.1} parent=1 // pred_check
      _
    $region39: #{tpu_custom_call.1} parent=1 // pred_check_branch
      %75 = sbr.rel (0) target = $region41
    $region40: #{tpu_custom_call.1} parent=1 // pred_region
      %76 = dma.done [#allocation6], 4096
    $region41: #{tpu_custom_call.1} parent=1 // pred_fallthru
      _
    // Predicated region
    $region42: #{tpu_custom_call.1} parent=1 // pred_check
      _
    $region43: #{tpu_custom_call.1} parent=1 // pred_check_branch
      %78 = sbr.rel (0) target = $region45
    $region44: #{tpu_custom_call.1} parent=1 // pred_region
      %79 = dma.done [#allocation9], 2048
    $region45: #{tpu_custom_call.1} parent=1 // pred_fallthru
      _
    %v81 = vld [vmem:[#allocation2] sm:$0xf]
    %v82 = vld [vmem:[#allocation5] sm:$0xff]
    %v83 = vld [vmem:[#allocation5 + $0x8] sm:$0xff]
    %v84 = vld [vmem:[#allocation5 + $0x10] sm:$0xff]
    %v85 = vld [vmem:[#allocation5 + $0x18] sm:$0xff]
    %v86 = vld [vmem:[#allocation5 + $0x20] sm:$0xff]
    %v87 = vld [vmem:[#allocation5 + $0x28] sm:$0xff]
    %v88 = vld [vmem:[#allocation5 + $0x30] sm:$0xff]
    %v89 = vld [vmem:[#allocation5 + $0x38] sm:$0xff]
    %v90 = vld [vmem:[#allocation5 + $0x40] sm:$0xff]
    %v91 = vld [vmem:[#allocation5 + $0x48] sm:$0xff]
    %v92 = vld [vmem:[#allocation5 + $0x50] sm:$0xff]
    %v93 = vld [vmem:[#allocation5 + $0x58] sm:$0xff]
    %v94 = vld [vmem:[#allocation5 + $0x60] sm:$0xff]
    %v95 = vld [vmem:[#allocation5 + $0x68] sm:$0xff]
    %v96 = vld [vmem:[#allocation5 + $0x70] sm:$0xff]
    %v97 = vld [vmem:[#allocation5 + $0x78] sm:$0xff]
    %v98 = vld [vmem:[%s2] sm:$0x3]
    %v100 = vlaneseq
    %v101 = vshrl.u32 %v100, 7
    %v102 = vsub.s32 0, %v101
    %v103 = vrot.slane %v98, %v102
    %v104 = vlaneseq
    %v105 = vshrl.u32 %v104, 7
    %v106 = vsub.s32 1, %v105
    %v107 = vrot.slane %v98, %v106
    %v126 = vunpack.c.l.b16 %v82
    %v127 = vunpack.c.h.b16 %v82
    %v128 = vunpack.c.l.b16 %v83
    %v129 = vunpack.c.h.b16 %v83
    %v130 = vunpack.c.l.b16 %v84
    %v131 = vunpack.c.h.b16 %v84
    %v132 = vunpack.c.l.b16 %v85
    %v133 = vunpack.c.h.b16 %v85
    %v134 = vunpack.c.l.b16 %v86
    %v135 = vunpack.c.h.b16 %v86
    %v136 = vunpack.c.l.b16 %v87
    %v137 = vunpack.c.h.b16 %v87
    %v138 = vunpack.c.l.b16 %v88
    %v139 = vunpack.c.h.b16 %v88
    %v140 = vunpack.c.l.b16 %v89
    %v141 = vunpack.c.h.b16 %v89
    %v142 = vunpack.c.l.b16 %v90
    %v143 = vunpack.c.h.b16 %v90
    %v144 = vunpack.c.l.b16 %v91
    %v145 = vunpack.c.h.b16 %v91
    %v146 = vunpack.c.l.b16 %v92
    %v147 = vunpack.c.h.b16 %v92
    %v148 = vunpack.c.l.b16 %v93
    %v149 = vunpack.c.h.b16 %v93
    %v150 = vunpack.c.l.b16 %v94
    %v151 = vunpack.c.h.b16 %v94
    %v152 = vunpack.c.l.b16 %v95
    %v153 = vunpack.c.h.b16 %v95
    %v154 = vunpack.c.l.b16 %v96
    %v155 = vunpack.c.h.b16 %v96
    %v156 = vunpack.c.l.b16 %v97
    %v157 = vunpack.c.h.b16 %v97
    %v158 = vpack.c.b16 %v128, %v126
    %v159 = vpack.c.b16 %v129, %v127
    %v160 = vpack.c.b16 %v132, %v130
    %v161 = vpack.c.b16 %v133, %v131
    %v162 = vpack.c.b16 %v136, %v134
    %v163 = vpack.c.b16 %v137, %v135
    %v164 = vpack.c.b16 %v140, %v138
    %v165 = vpack.c.b16 %v141, %v139
    %v166 = vpack.c.b16 %v144, %v142
    %v167 = vpack.c.b16 %v145, %v143
    %v168 = vpack.c.b16 %v148, %v146
    %v169 = vpack.c.b16 %v149, %v147
    %v170 = vpack.c.b16 %v152, %v150
    %v171 = vpack.c.b16 %v153, %v151
    %v172 = vpack.c.b16 %v156, %v154
    %v173 = vpack.c.b16 %v157, %v155
    %190 = vmatprep.subr.bf16.mxu0 %v159
    %191 = vmatpush1.bf16.msra.mxu0 %v158
    %192 = vmatprep.subr.bf16.mxu0 %v161
    %193 = vmatpush1.bf16.msra.mxu0 %v160
    %194 = vmatprep.subr.bf16.mxu0 %v163
    %195 = vmatpush1.bf16.msra.mxu0 %v162
    %196 = vmatprep.subr.bf16.mxu0 %v165
    %197 = vmatpush1.bf16.msra.mxu0 %v164
    %198 = vmatprep.subr.bf16.mxu0 %v167
    %199 = vmatpush1.bf16.msra.mxu0 %v166
    %200 = vmatprep.subr.bf16.mxu0 %v169
    %201 = vmatpush1.bf16.msra.mxu0 %v168
    %202 = vmatprep.subr.bf16.mxu0 %v171
    %203 = vmatpush1.bf16.msra.mxu0 %v170
    %204 = vmatprep.subr.bf16.mxu0 %v173
    %205 = vmatpush1.bf16.msra.mxu0 %v172
    %206 = vmatprep.subr.bf16.mxu0 0
    %207 = vmatpush1.bf16.msra.mxu0 0
    %208 = vmatprep.subr.bf16.mxu0 0
    %209 = vmatpush1.bf16.msra.mxu0 0
    %210 = vmatprep.subr.bf16.mxu0 0
    %211 = vmatpush1.bf16.msra.mxu0 0
    %212 = vmatprep.subr.bf16.mxu0 0
    %213 = vmatpush1.bf16.msra.mxu0 0
    %214 = vmatprep.subr.bf16.mxu0 0
    %215 = vmatpush1.bf16.msra.mxu0 0
    %216 = vmatprep.subr.bf16.mxu0 0
    %217 = vmatpush1.bf16.msra.mxu0 0
    %218 = vmatprep.subr.bf16.mxu0 0
    %219 = vmatpush1.bf16.msra.mxu0 0
    %220 = vmatprep.subr.bf16.mxu0 0
    %221 = vmatpush1.bf16.msra.mxu0 0
    %222 = vmatprep.mubr.bf16.mxu0 0
    %223 = vmatmul.mubr.bf16.gmra.mrb[0].mxu0 %v81
    %v224 = vpop.f32.mrb[0].mxu0
    %v225 = vadd.f32 %v103, %v224
    %v226 = vpop.f32.mrb[0].mxu0
    %v227 = vadd.f32 %v107, %v226
    %v228 = vpop.f32.mrb[0].mxu0
    %v229 = vpop.f32.mrb[0].mxu0
    %230 = vdwg.mxu0
    %vm231 = vcmp.gt.f32.partialorder %v225, 0.0
    %vm232 = vcmp.gt.f32.partialorder %v227, 0.0
    %v233 = vmul.f32 %v225, 0.01
    %v234 = vmul.f32 %v227, 0.01
    %v235 = vsel %vm231, %v225, %v233
    %v236 = vsel %vm232, %v227, %v234
    %v237 = vpack.c.bf16 %v235, %v235
    %v238 = vpack.c.bf16 %v236, %v236
    %v239 = vld [vmem:[#allocation7] sm:$0xff]
    %v240 = vld [vmem:[#allocation7 + $0x8] sm:$0xff]
    %v241 = vld [vmem:[#allocation7 + $0x10] sm:$0xff]
    %v242 = vld [vmem:[#allocation7 + $0x18] sm:$0xff]
    %v243 = vld [vmem:[#allocation7 + $0x20] sm:$0xff]
    %v244 = vld [vmem:[#allocation7 + $0x28] sm:$0xff]
    %v245 = vld [vmem:[#allocation7 + $0x30] sm:$0xff]
    %v246 = vld [vmem:[#allocation7 + $0x38] sm:$0xff]
    %v247 = vld [vmem:[#allocation7 + $0x40] sm:$0xff]
    %v248 = vld [vmem:[#allocation7 + $0x48] sm:$0xff]
    %v249 = vld [vmem:[#allocation7 + $0x50] sm:$0xff]
    %v250 = vld [vmem:[#allocation7 + $0x58] sm:$0xff]
    %v251 = vld [vmem:[#allocation7 + $0x60] sm:$0xff]
    %v252 = vld [vmem:[#allocation7 + $0x68] sm:$0xff]
    %v253 = vld [vmem:[#allocation7 + $0x70] sm:$0xff]
    %v254 = vld [vmem:[#allocation7 + $0x78] sm:$0xff]
    %v255 = vld [vmem:[#allocation7 + $0x80] sm:$0xff]
    %v256 = vld [vmem:[#allocation7 + $0x88] sm:$0xff]
    %v257 = vld [vmem:[#allocation7 + $0x90] sm:$0xff]
    %v258 = vld [vmem:[#allocation7 + $0x98] sm:$0xff]
    %v259 = vld [vmem:[#allocation7 + $0xa0] sm:$0xff]
    %v260 = vld [vmem:[#allocation7 + $0xa8] sm:$0xff]
    %v261 = vld [vmem:[#allocation7 + $0xb0] sm:$0xff]
    %v262 = vld [vmem:[#allocation7 + $0xb8] sm:$0xff]
    %v263 = vld [vmem:[#allocation7 + $0xc0] sm:$0xff]
    %v264 = vld [vmem:[#allocation7 + $0xc8] sm:$0xff]
    %v265 = vld [vmem:[#allocation7 + $0xd0] sm:$0xff]
    %v266 = vld [vmem:[#allocation7 + $0xd8] sm:$0xff]
    %v267 = vld [vmem:[#allocation7 + $0xe0] sm:$0xff]
    %v268 = vld [vmem:[#allocation7 + $0xe8] sm:$0xff]
    %v269 = vld [vmem:[#allocation7 + $0xf0] sm:$0xff]
    %v270 = vld [vmem:[#allocation7 + $0xf8] sm:$0xff]
    %v271 = vld [vmem:[%s4] sm:$0x3]
    %v273 = vlaneseq
    %v274 = vshrl.u32 %v273, 7
    %v275 = vsub.s32 0, %v274
    %v276 = vrot.slane %v271, %v275
    %v277 = vlaneseq
    %v278 = vshrl.u32 %v277, 7
    %v279 = vsub.s32 1, %v278
    %v280 = vrot.slane %v271, %v279
    %v315 = vunpack.c.l.b16 %v239
    %v316 = vunpack.c.h.b16 %v239
    %v317 = vunpack.c.l.b16 %v240
    %v318 = vunpack.c.h.b16 %v240
    %v319 = vunpack.c.l.b16 %v241
    %v320 = vunpack.c.h.b16 %v241
    %v321 = vunpack.c.l.b16 %v242
    %v322 = vunpack.c.h.b16 %v242
    %v323 = vunpack.c.l.b16 %v243
    %v324 = vunpack.c.h.b16 %v243
    %v325 = vunpack.c.l.b16 %v244
    %v326 = vunpack.c.h.b16 %v244
    %v327 = vunpack.c.l.b16 %v245
    %v328 = vunpack.c.h.b16 %v245
    %v329 = vunpack.c.l.b16 %v246
    %v330 = vunpack.c.h.b16 %v246
    %v331 = vunpack.c.l.b16 %v247
    %v332 = vunpack.c.h.b16 %v247
    %v333 = vunpack.c.l.b16 %v248
    %v334 = vunpack.c.h.b16 %v248
    %v335 = vunpack.c.l.b16 %v249
    %v336 = vunpack.c.h.b16 %v249
    %v337 = vunpack.c.l.b16 %v250
    %v338 = vunpack.c.h.b16 %v250
    %v339 = vunpack.c.l.b16 %v251
    %v340 = vunpack.c.h.b16 %v251
    %v341 = vunpack.c.l.b16 %v252
    %v342 = vunpack.c.h.b16 %v252
    %v343 = vunpack.c.l.b16 %v253
    %v344 = vunpack.c.h.b16 %v253
    %v345 = vunpack.c.l.b16 %v254
    %v346 = vunpack.c.h.b16 %v254
    %v347 = vunpack.c.l.b16 %v255
    %v348 = vunpack.c.h.b16 %v255
    %v349 = vunpack.c.l.b16 %v256
    %v350 = vunpack.c.h.b16 %v256
    %v351 = vunpack.c.l.b16 %v257
    %v352 = vunpack.c.h.b16 %v257
    %v353 = vunpack.c.l.b16 %v258
    %v354 = vunpack.c.h.b16 %v258
    %v355 = vunpack.c.l.b16 %v259
    %v356 = vunpack.c.h.b16 %v259
    %v357 = vunpack.c.l.b16 %v260
    %v358 = vunpack.c.h.b16 %v260
    %v359 = vunpack.c.l.b16 %v261
    %v360 = vunpack.c.h.b16 %v261
    %v361 = vunpack.c.l.b16 %v262
    %v362 = vunpack.c.h.b16 %v262
    %v363 = vunpack.c.l.b16 %v263
    %v364 = vunpack.c.h.b16 %v263
    %v365 = vunpack.c.l.b16 %v264
    %v366 = vunpack.c.h.b16 %v264
    %v367 = vunpack.c.l.b16 %v265
    %v368 = vunpack.c.h.b16 %v265
    %v369 = vunpack.c.l.b16 %v266
    %v370 = vunpack.c.h.b16 %v266
    %v371 = vunpack.c.l.b16 %v267
    %v372 = vunpack.c.h.b16 %v267
    %v373 = vunpack.c.l.b16 %v268
    %v374 = vunpack.c.h.b16 %v268
    %v375 = vunpack.c.l.b16 %v269
    %v376 = vunpack.c.h.b16 %v269
    %v377 = vunpack.c.l.b16 %v270
    %v378 = vunpack.c.h.b16 %v270
    %v379 = vpack.c.b16 %v317, %v315
    %v380 = vpack.c.b16 %v318, %v316
    %v381 = vpack.c.b16 %v321, %v319
    %v382 = vpack.c.b16 %v322, %v320
    %v383 = vpack.c.b16 %v325, %v323
    %v384 = vpack.c.b16 %v326, %v324
    %v385 = vpack.c.b16 %v329, %v327
    %v386 = vpack.c.b16 %v330, %v328
    %v387 = vpack.c.b16 %v333, %v331
    %v388 = vpack.c.b16 %v334, %v332
    %v389 = vpack.c.b16 %v337, %v335
    %v390 = vpack.c.b16 %v338, %v336
    %v391 = vpack.c.b16 %v341, %v339
    %v392 = vpack.c.b16 %v342, %v340
    %v393 = vpack.c.b16 %v345, %v343
    %v394 = vpack.c.b16 %v346, %v344
    %v395 = vpack.c.b16 %v349, %v347
    %v396 = vpack.c.b16 %v350, %v348
    %v397 = vpack.c.b16 %v353, %v351
    %v398 = vpack.c.b16 %v354, %v352
    %v399 = vpack.c.b16 %v357, %v355
    %v400 = vpack.c.b16 %v358, %v356
    %v401 = vpack.c.b16 %v361, %v359
    %v402 = vpack.c.b16 %v362, %v360
    %v403 = vpack.c.b16 %v365, %v363
    %v404 = vpack.c.b16 %v366, %v364
    %v405 = vpack.c.b16 %v369, %v367
    %v406 = vpack.c.b16 %v370, %v368
    %v407 = vpack.c.b16 %v373, %v371
    %v408 = vpack.c.b16 %v374, %v372
    %v409 = vpack.c.b16 %v377, %v375
    %v410 = vpack.c.b16 %v378, %v376
    %443 = vmatprep.subr.bf16.mxu0 %v380
    %444 = vmatpush1.bf16.msra.mxu0 %v379
    %445 = vmatprep.subr.bf16.mxu0 %v382
    %446 = vmatpush1.bf16.msra.mxu0 %v381
    %447 = vmatprep.subr.bf16.mxu0 %v384
    %448 = vmatpush1.bf16.msra.mxu0 %v383
    %449 = vmatprep.subr.bf16.mxu0 %v386
    %450 = vmatpush1.bf16.msra.mxu0 %v385
    %451 = vmatprep.subr.bf16.mxu0 %v388
    %452 = vmatpush1.bf16.msra.mxu0 %v387
    %453 = vmatprep.subr.bf16.mxu0 %v390
    %454 = vmatpush1.bf16.msra.mxu0 %v389
    %455 = vmatprep.subr.bf16.mxu0 %v392
    %456 = vmatpush1.bf16.msra.mxu0 %v391
    %457 = vmatprep.subr.bf16.mxu0 %v394
    %458 = vmatpush1.bf16.msra.mxu0 %v393
    %459 = vmatprep.subr.bf16.mxu0 %v396
    %460 = vmatpush1.bf16.msra.mxu0 %v395
    %461 = vmatprep.subr.bf16.mxu0 %v398
    %462 = vmatpush1.bf16.msra.mxu0 %v397
    %463 = vmatprep.subr.bf16.mxu0 %v400
    %464 = vmatpush1.bf16.msra.mxu0 %v399
    %465 = vmatprep.subr.bf16.mxu0 %v402
    %466 = vmatpush1.bf16.msra.mxu0 %v401
    %467 = vmatprep.subr.bf16.mxu0 %v404
    %468 = vmatpush1.bf16.msra.mxu0 %v403
    %469 = vmatprep.subr.bf16.mxu0 %v406
    %470 = vmatpush1.bf16.msra.mxu0 %v405
    %471 = vmatprep.subr.bf16.mxu0 %v408
    %472 = vmatpush1.bf16.msra.mxu0 %v407
    %473 = vmatprep.subr.bf16.mxu0 %v410
    %474 = vmatpush1.bf16.msra.mxu0 %v409
    %475 = vmatprep.mubr.bf16.mxu0 %v238
    %476 = vmatmul.mubr.bf16.gmra.mrb[0].mxu0 %v237
    %v477 = vpop.f32.mrb[0].mxu0
    %v478 = vadd.f32 %v276, %v477
    %v479 = vpop.f32.mrb[0].mxu0
    %v480 = vadd.f32 %v280, %v479
    %v481 = vpop.f32.mrb[0].mxu0
    %v482 = vpop.f32.mrb[0].mxu0
    %483 = vdwg.mxu0
    %vm484 = vcmp.gt.f32.partialorder %v478, 0.0
    %vm485 = vcmp.gt.f32.partialorder %v480, 0.0
    %v486 = vmul.f32 %v478, 0.01
    %v487 = vmul.f32 %v480, 0.01
    %v488 = vsel %vm484, %v478, %v486
    %v489 = vsel %vm485, %v480, %v487
    %v490 = vpack.c.bf16 %v488, %v488
    %v491 = vpack.c.bf16 %v489, %v489
    %v492 = vld [vmem:[#allocation8] sm:$0xf]
    %v493 = vld [vmem:[#allocation8 + $0x4] sm:$0xf]
    %v494 = vld [vmem:[#allocation8 + $0x8] sm:$0xf]
    %v495 = vld [vmem:[#allocation8 + $0xc] sm:$0xf]
    %v496 = vld [vmem:[#allocation8 + $0x10] sm:$0xf]
    %v497 = vld [vmem:[#allocation8 + $0x14] sm:$0xf]
    %v498 = vld [vmem:[#allocation8 + $0x18] sm:$0xf]
    %v499 = vld [vmem:[#allocation8 + $0x1c] sm:$0xf]
    %v500 = vld [vmem:[#allocation8 + $0x20] sm:$0xf]
    %v501 = vld [vmem:[#allocation8 + $0x24] sm:$0xf]
    %v502 = vld [vmem:[#allocation8 + $0x28] sm:$0xf]
    %v503 = vld [vmem:[#allocation8 + $0x2c] sm:$0xf]
    %v504 = vld [vmem:[#allocation8 + $0x30] sm:$0xf]
    %v505 = vld [vmem:[#allocation8 + $0x34] sm:$0xf]
    %v506 = vld [vmem:[#allocation8 + $0x38] sm:$0xf]
    %v507 = vld [vmem:[#allocation8 + $0x3c] sm:$0xf]
    %v508 = vld [vmem:[#allocation8 + $0x40] sm:$0xf]
    %v509 = vld [vmem:[#allocation8 + $0x44] sm:$0xf]
    %v510 = vld [vmem:[#allocation8 + $0x48] sm:$0xf]
    %v511 = vld [vmem:[#allocation8 + $0x4c] sm:$0xf]
    %v512 = vld [vmem:[#allocation8 + $0x50] sm:$0xf]
    %v513 = vld [vmem:[#allocation8 + $0x54] sm:$0xf]
    %v514 = vld [vmem:[#allocation8 + $0x58] sm:$0xf]
    %v515 = vld [vmem:[#allocation8 + $0x5c] sm:$0xf]
    %v516 = vld [vmem:[#allocation8 + $0x60] sm:$0xf]
    %v517 = vld [vmem:[#allocation8 + $0x64] sm:$0xf]
    %v518 = vld [vmem:[#allocation8 + $0x68] sm:$0xf]
    %v519 = vld [vmem:[#allocation8 + $0x6c] sm:$0xf]
    %v520 = vld [vmem:[#allocation8 + $0x70] sm:$0xf]
    %v521 = vld [vmem:[#allocation8 + $0x74] sm:$0xf]
    %v522 = vld [vmem:[#allocation8 + $0x78] sm:$0xf]
    %v523 = vld [vmem:[#allocation8 + $0x7c] sm:$0xf]
    %v524 = vld [vmem:[%s6] sm:$0x1]
    %v526 = vlaneseq
    %v527 = vshrl.u32 %v526, 7
    %v528 = vsub.s32 0, %v527
    %v529 = vrot.slane %v524, %v528
    %v563 = vunpack.c.l.b16 %v492
    %v564 = vunpack.c.l.b16 %v493
    %v565 = vunpack.c.l.b16 %v494
    %v566 = vunpack.c.l.b16 %v495
    %v567 = vunpack.c.l.b16 %v496
    %v568 = vunpack.c.l.b16 %v497
    %v569 = vunpack.c.l.b16 %v498
    %v570 = vunpack.c.l.b16 %v499
    %v571 = vunpack.c.l.b16 %v500
    %v572 = vunpack.c.l.b16 %v501
    %v573 = vunpack.c.l.b16 %v502
    %v574 = vunpack.c.l.b16 %v503
    %v575 = vunpack.c.l.b16 %v504
    %v576 = vunpack.c.l.b16 %v505
    %v577 = vunpack.c.l.b16 %v506
    %v578 = vunpack.c.l.b16 %v507
    %v579 = vunpack.c.l.b16 %v508
    %v580 = vunpack.c.l.b16 %v509
    %v581 = vunpack.c.l.b16 %v510
    %v582 = vunpack.c.l.b16 %v511
    %v583 = vunpack.c.l.b16 %v512
    %v584 = vunpack.c.l.b16 %v513
    %v585 = vunpack.c.l.b16 %v514
    %v586 = vunpack.c.l.b16 %v515
    %v587 = vunpack.c.l.b16 %v516
    %v588 = vunpack.c.l.b16 %v517
    %v589 = vunpack.c.l.b16 %v518
    %v590 = vunpack.c.l.b16 %v519
    %v591 = vunpack.c.l.b16 %v520
    %v592 = vunpack.c.l.b16 %v521
    %v593 = vunpack.c.l.b16 %v522
    %v594 = vunpack.c.l.b16 %v523
    %v595 = vpack.c.b16 %v564, %v563
    %v596 = vpack.c.b16 %v566, %v565
    %v597 = vpack.c.b16 %v568, %v567
    %v598 = vpack.c.b16 %v570, %v569
    %v599 = vpack.c.b16 %v572, %v571
    %v600 = vpack.c.b16 %v574, %v573
    %v601 = vpack.c.b16 %v576, %v575
    %v602 = vpack.c.b16 %v578, %v577
    %v603 = vpack.c.b16 %v580, %v579
    %v604 = vpack.c.b16 %v582, %v581
    %v605 = vpack.c.b16 %v584, %v583
    %v606 = vpack.c.b16 %v586, %v585
    %v607 = vpack.c.b16 %v588, %v587
    %v608 = vpack.c.b16 %v590, %v589
    %v609 = vpack.c.b16 %v592, %v591
    %v610 = vpack.c.b16 %v594, %v593
    %627 = vmatprep.subr.bf16.mxu0 0
    %628 = vmatpush1.bf16.msra.mxu0 %v595
    %629 = vmatprep.subr.bf16.mxu0 0
    %630 = vmatpush1.bf16.msra.mxu0 %v596
    %631 = vmatprep.subr.bf16.mxu0 0
    %632 = vmatpush1.bf16.msra.mxu0 %v597
    %633 = vmatprep.subr.bf16.mxu0 0
    %634 = vmatpush1.bf16.msra.mxu0 %v598
    %635 = vmatprep.subr.bf16.mxu0 0
    %636 = vmatpush1.bf16.msra.mxu0 %v599
    %637 = vmatprep.subr.bf16.mxu0 0
    %638 = vmatpush1.bf16.msra.mxu0 %v600
    %639 = vmatprep.subr.bf16.mxu0 0
    %640 = vmatpush1.bf16.msra.mxu0 %v601
    %641 = vmatprep.subr.bf16.mxu0 0
    %642 = vmatpush1.bf16.msra.mxu0 %v602
    %643 = vmatprep.subr.bf16.mxu0 0
    %644 = vmatpush1.bf16.msra.mxu0 %v603
    %645 = vmatprep.subr.bf16.mxu0 0
    %646 = vmatpush1.bf16.msra.mxu0 %v604
    %647 = vmatprep.subr.bf16.mxu0 0
    %648 = vmatpush1.bf16.msra.mxu0 %v605
    %649 = vmatprep.subr.bf16.mxu0 0
    %650 = vmatpush1.bf16.msra.mxu0 %v606
    %651 = vmatprep.subr.bf16.mxu0 0
    %652 = vmatpush1.bf16.msra.mxu0 %v607
    %653 = vmatprep.subr.bf16.mxu0 0
    %654 = vmatpush1.bf16.msra.mxu0 %v608
    %655 = vmatprep.subr.bf16.mxu0 0
    %656 = vmatpush1.bf16.msra.mxu0 %v609
    %657 = vmatprep.subr.bf16.mxu0 0
    %658 = vmatpush1.bf16.msra.mxu0 %v610
    %659 = vmatprep.mubr.bf16.mxu0 %v491
    %660 = vmatmul.mubr.bf16.gmra.mrb[0].mxu0 %v490
    %v661 = vpop.f32.mrb[0].mxu0
    %v662 = vadd.f32 %v529, %v661
    %v663 = vpop.f32.mrb[0].mxu0
    %v664 = vpop.f32.mrb[0].mxu0
    %v665 = vpop.f32.mrb[0].mxu0
    %666 = vdwg.mxu0
    %v667 = vpack.c.bf16 %v662, %v662
    %668 = vst [vmem:[#allocation10] sm:$0xf] %v667
    // Predicated region
    $region46: #{tpu_custom_call.1} parent=1 // pred_check
      _
    $region47: #{tpu_custom_call.1} parent=1 // pred_check_branch
      %670 = sbr.rel (0) target = $region49
    $region48: #{tpu_custom_call.1} parent=1 // pred_region
      %s672 = ssub.s32 64, 64
      %673 = vsyncadd [#allocation4], %s672
      %s675 = sshll.u32 [#allocation10], 4
      %s676 = int_to_ptr.vmem [resolvable:$true] %s675
      %678 = dma.vmem_to_hbm [thread:$0]  %s676, 64, %s7, [#allocation4]
    $region49: #{tpu_custom_call.1} parent=1 // pred_fallthru
      _
    // Predicated region
    $region50: #{tpu_custom_call.1} parent=1 // pred_check
      _
    $region51: #{tpu_custom_call.1} parent=1 // pred_check_branch
      %680 = sbr.rel (0) target = $region53
    $region52: #{tpu_custom_call.1} parent=1 // pred_region
      %681 = dma.done [#allocation4], 64
    $region53: #{tpu_custom_call.1} parent=1 // pred_fallthru
      _
    %682 = vsyncpa [#allocation3], 1
    %683 = vsyncpa [#allocation6], 1
    %684 = vsyncpa [#allocation9], 1
    %685 = vsyncpa [#allocation4], 1

</llo_original>
